<compile_context>
chip_gen: v7x
topology: tpu7x:2x2x1
jax: 0.10.0
libtpu: 0.0.40
codegen_flags: <defaults>
</compile_context>

<pallas_src>
import jax
import jax.numpy as jnp
from jax.experimental import pallas as pl
from jax.experimental.pallas import tpu as pltpu


def _gradient_rgb_kernel(x_ref, ha_ref, hb_ref, o_ref):
    # x_ref : (1, C, tH, W)  one (batch, H-tile) block (W -> lanes, tH -> sublanes)
    # ha_ref: (1, 1, C, W)   image row directly ABOVE this tile (zeros at top edge)
    # hb_ref: (1, 1, C, W)   image row directly BELOW this tile (zeros at bottom edge)
    # o_ref : (1, C, tH, W)
    _, C, tH, W = x_ref.shape

    # Small iotas only (no full (C,H,W) iota/compare); the selects broadcast them.
    row = jax.lax.broadcasted_iota(jnp.int32, (tH, 1), 0)
    col = jax.lax.broadcasted_iota(jnp.int32, (1, W), 1)
    top_row, bot_row = row == 0, row == tH - 1
    first_col, last_col = col == 0, col == W - 1
    eps = jnp.float32(1e-6)

    for c in range(C):  # C == 3 (RGB), fully unrolled; channels are independent.
        xc = x_ref[0, c]                                  # (tH, W)

        # +/-1 row/col shifts via XLU rotates on the already-resident block.
        # pltpu.roll matches jnp.roll: result[i] = x[i - shift]; positive shifts only.
        up    = pltpu.roll(xc, shift=1,      axis=0)      # up[i]    = xc[i-1]   (wraps at i==0)
        down  = pltpu.roll(xc, shift=tH - 1, axis=0)      # down[i]  = xc[i+1]   (wraps at i==tH-1)
        left  = pltpu.roll(xc, shift=1,      axis=1)      # left[j]  = xc[:,j-1] (wraps at j==0)
        right = pltpu.roll(xc, shift=W - 1,  axis=1)      # right[j] = xc[:,j+1] (wraps at j==W-1)

        # Patch the wrapped rows with the true neighbour (halo) rows, and the
        # wrapped columns with zeros (W is never tiled, so edges are exact).
        up    = jnp.where(top_row,   ha_ref[0, 0, c:c + 1, :], up)
        down  = jnp.where(bot_row,   hb_ref[0, 0, c:c + 1, :], down)
        left  = jnp.where(first_col, 0.0, left)
        right = jnp.where(last_col,  0.0, right)

        g_v = down - up        # vertical-gradient conv (zero padding)
        g_h = right - left     # horizontal-gradient conv (zero padding)
        o_ref[0, c] = jnp.sqrt(g_v * g_v + g_h * g_h + eps).astype(o_ref.dtype)


def _pick_tile_h(H, C, W, itemsize, target_bytes):
    """Largest H-tile dividing H, multiple of 8 (or == H), ~target_bytes per block."""
    row_bytes = max(1, C * W * itemsize)
    max_rows = max(8, target_bytes // row_bytes)
    if H <= max_rows:
        return H
    cand = (min(H, max_rows) // 8) * 8
    while cand >= 8:
        if H % cand == 0:
            return cand
        cand -= 8
    # TODO(synk): pad H for a ragged last tile when no multiple-of-8 divisor exists.
    return H


def get_gradient_rgb(x, *, block_h=None, target_block_bytes=2 * 1024 * 1024):
    """x: (N, 3, H, W) float32, NCHW exactly like the PyTorch module."""
    N, C, H, W = x.shape
    itemsize = jnp.dtype(x.dtype).itemsize
    tH = _pick_tile_h(H, C, W, itemsize, target_block_bytes) if block_h is None else block_h
    if H % tH != 0 or not (tH == H or tH % 8 == 0):
        raise ValueError(f"block_h={tH} must divide H={H} and be a multiple of 8 (or == H)")
    T = H // tH

    # Host-side halo rows: for tile h, image rows h*tH-1 (above) and (h+1)*tH
    # (below); zeros at the image border. O(N*C*T*W) elements -- negligible.
    zrow = jnp.zeros((N, 1, C, W), x.dtype)
    if T > 1:
        above = jnp.transpose(x[:, :, tH - 1:H - 1:tH, :], (0, 2, 1, 3))  # (N, T-1, C, W)
        below = jnp.transpose(x[:, :, tH:H:tH, :], (0, 2, 1, 3))          # (N, T-1, C, W)
        halo_above = jnp.concatenate([zrow, above], axis=1)               # (N, T, C, W)
        halo_below = jnp.concatenate([below, zrow], axis=1)               # (N, T, C, W)
    else:
        halo_above = zrow
        halo_below = zrow

    grid_spec = pltpu.PrefetchScalarGridSpec(
        num_scalar_prefetch=0,
        grid=(N, T),
        in_specs=[
            pl.BlockSpec((1, C, tH, W), lambda n, h: (n, 0, h, 0)),
            pl.BlockSpec((1, 1, C, W), lambda n, h: (n, h, 0, 0)),
            pl.BlockSpec((1, 1, C, W), lambda n, h: (n, h, 0, 0)),
        ],
        out_specs=pl.BlockSpec((1, C, tH, W), lambda n, h: (n, 0, h, 0)),
    )
    elems = N * C * H * W
    return pl.pallas_call(
        _gradient_rgb_kernel,
        out_shape=jax.ShapeDtypeStruct((N, C, H, W), x.dtype),
        grid_spec=grid_spec,
        compiler_params=pltpu.CompilerParams(
            dimension_semantics=("parallel", "parallel"),
            vmem_limit_bytes=32 * 1024 * 1024,
        ),
        cost_estimate=pl.CostEstimate(
            flops=10 * elems,
            transcendentals=elems,
            bytes_accessed=2 * elems * itemsize,
        ),
    )(x, halo_above, halo_below)


def get_gradient_rgb_reference(x):
    """Pure-JAX reference mirroring the PyTorch forward (NCHW conv2d, padding=1)."""
    kv = jnp.array([[0., -1., 0.], [0., 0., 0.], [0., 1., 0.]],
                   jnp.float32).reshape(1, 1, 3, 3)
    kh = jnp.array([[0., 0., 0.], [-1., 0., 1.], [0., 0., 0.]],
                   jnp.float32).reshape(1, 1, 3, 3)
    dn = ('NCHW', 'OIHW', 'NCHW')
    outs = []
    for c in range(x.shape[1]):
        xc = x[:, c:c + 1]
        v = jax.lax.conv_general_dilated(xc, kv, (1, 1), ((1, 1), (1, 1)),
                                         dimension_numbers=dn)
        h = jax.lax.conv_general_dilated(xc, kh, (1, 1), ((1, 1), (1, 1)),
                                         dimension_numbers=dn)
        outs.append(jnp.sqrt(v * v + h * h + 1e-6))
    return jnp.concatenate(outs, axis=1)


if __name__ == "__main__":
    # Module implies 3 (RGB) channels; W=128 keeps the output lane-dense.
    N, C, H, W = 2, 3, 32, 128

    key = jax.random.PRNGKey(0)
    x = jax.random.normal(key, (N, C, H, W), jnp.float32)
    ref = get_gradient_rgb_reference(x)

    # Auto-picked tile (whole image per step at this small size).
    out = jax.block_until_ready(get_gradient_rgb(x))
    assert out.shape == (N, C, H, W)
    assert jnp.allclose(out, ref, rtol=1e-5, atol=1e-5), (
        float(jnp.max(jnp.abs(out - ref))))

    # Forced H-tiling (tH=8 -> 4 tiles) to exercise the halo path.
    out_tiled = jax.block_until_ready(get_gradient_rgb(x, block_h=8))
    assert jnp.allclose(out_tiled, ref, rtol=1e-5, atol=1e-5), (
        float(jnp.max(jnp.abs(out_tiled - ref))))

    print("KERNEL_OK")
</pallas_src>

<mosaic_0001>
module attributes {stable_mosaic.version = 11 : i64} {
  func.func @_gradient_rgb_kernel(%arg0: i32, %arg1: i32, %arg2: memref<1x3x32x128xf32, #tpu.memory_space<vmem>>, %arg3: memref<1x1x3x128xf32, #tpu.memory_space<vmem>>, %arg4: memref<1x1x3x128xf32, #tpu.memory_space<vmem>>, %arg5: memref<1x3x32x128xf32, #tpu.memory_space<vmem>>) attributes {dimension_semantics = [#tpu.dimension_semantics<parallel>, #tpu.dimension_semantics<parallel>], iteration_bounds = array<i64: 2, 1>, scalar_prefetch = 0 : i64, scratch_operands = 0 : i64, tpu.core_type = #tpu.core_type<tc>, window_params = [{transform_indices = @transform_0, window_bounds = array<i64: 1, 3, 32, 128>}, {transform_indices = @transform_1, window_bounds = array<i64: 1, 1, 3, 128>}, {transform_indices = @transform_2, window_bounds = array<i64: 1, 1, 3, 128>}, {transform_indices = @transform_3, window_bounds = array<i64: 1, 3, 32, 128>}]} {
    %0 = tpu.iota {dimensions = array<i32: 0>} : vector<32x1xi32>
    %1 = tpu.iota {dimensions = array<i32: 1>} : vector<1x128xi32>
    %c0_i32 = arith.constant 0 : i32
    %2 = vector.broadcast %c0_i32 : i32 to vector<32x1xi32>
    %3 = arith.cmpi eq, %0, %2 : vector<32x1xi32>
    %c31_i32 = arith.constant 31 : i32
    %4 = vector.broadcast %c31_i32 : i32 to vector<32x1xi32>
    %5 = arith.cmpi eq, %0, %4 : vector<32x1xi32>
    %c0_i32_0 = arith.constant 0 : i32
    %6 = vector.broadcast %c0_i32_0 : i32 to vector<1x128xi32>
    %7 = arith.cmpi eq, %1, %6 : vector<1x128xi32>
    %c127_i32 = arith.constant 127 : i32
    %8 = vector.broadcast %c127_i32 : i32 to vector<1x128xi32>
    %9 = arith.cmpi eq, %1, %8 : vector<1x128xi32>
    %c0 = arith.constant 0 : index
    %c0_1 = arith.constant 0 : index
    %c0_2 = arith.constant 0 : index
    %c0_3 = arith.constant 0 : index
    %10 = vector.load %arg2[%c0, %c0_1, %c0_2, %c0_3] : memref<1x3x32x128xf32, #tpu.memory_space<vmem>>, vector<1x1x32x128xf32>
    %11 = vector.shape_cast %10 : vector<1x1x32x128xf32> to vector<32x128xf32>
    %c1_i32 = arith.constant 1 : i32
    %12 = tpu.dynamic_rotate %11 by %c1_i32 dim 0 : vector<32x128xf32>, i32 -> vector<32x128xf32>
    %c31_i32_4 = arith.constant 31 : i32
    %13 = tpu.dynamic_rotate %11 by %c31_i32_4 dim 0 : vector<32x128xf32>, i32 -> vector<32x128xf32>
    %c1_i32_5 = arith.constant 1 : i32
    %14 = tpu.dynamic_rotate %11 by %c1_i32_5 dim 1 : vector<32x128xf32>, i32 -> vector<32x128xf32>
    %c127_i32_6 = arith.constant 127 : i32
    %15 = tpu.dynamic_rotate %11 by %c127_i32_6 dim 1 : vector<32x128xf32>, i32 -> vector<32x128xf32>
    %c0_7 = arith.constant 0 : index
    %c0_8 = arith.constant 0 : index
    %c0_9 = arith.constant 0 : index
    %c0_10 = arith.constant 0 : index
    %16 = vector.load %arg3[%c0_7, %c0_8, %c0_9, %c0_10] : memref<1x1x3x128xf32, #tpu.memory_space<vmem>>, vector<1x1x1x128xf32>
    %17 = vector.shape_cast %16 : vector<1x1x1x128xf32> to vector<1x128xf32>
    %18 = vector.shape_cast %3 : vector<32x1xi1> to vector<32x1xi1>
    %19 = vector.broadcast %18 : vector<32x1xi1> to vector<32x128xi1>
    %20 = vector.shape_cast %17 : vector<1x128xf32> to vector<1x128xf32>
    %21 = vector.broadcast %20 : vector<1x128xf32> to vector<32x128xf32>
    %22 = arith.select %19, %21, %12 : vector<32x128xi1>, vector<32x128xf32>
    %c0_11 = arith.constant 0 : index
    %c0_12 = arith.constant 0 : index
    %c0_13 = arith.constant 0 : index
    %c0_14 = arith.constant 0 : index
    %23 = vector.load %arg4[%c0_11, %c0_12, %c0_13, %c0_14] : memref<1x1x3x128xf32, #tpu.memory_space<vmem>>, vector<1x1x1x128xf32>
    %24 = vector.shape_cast %23 : vector<1x1x1x128xf32> to vector<1x128xf32>
    %25 = vector.shape_cast %5 : vector<32x1xi1> to vector<32x1xi1>
    %26 = vector.broadcast %25 : vector<32x1xi1> to vector<32x128xi1>
    %27 = vector.shape_cast %24 : vector<1x128xf32> to vector<1x128xf32>
    %28 = vector.broadcast %27 : vector<1x128xf32> to vector<32x128xf32>
    %29 = arith.select %26, %28, %13 : vector<32x128xi1>, vector<32x128xf32>
    %cst = arith.constant 0.000000e+00 : f32
    %30 = vector.shape_cast %7 : vector<1x128xi1> to vector<1x128xi1>
    %31 = vector.broadcast %30 : vector<1x128xi1> to vector<32x128xi1>
    %32 = vector.broadcast %cst : f32 to vector<32x128xf32>
    %33 = arith.select %31, %32, %14 : vector<32x128xi1>, vector<32x128xf32>
    %cst_15 = arith.constant 0.000000e+00 : f32
    %34 = vector.shape_cast %9 : vector<1x128xi1> to vector<1x128xi1>
    %35 = vector.broadcast %34 : vector<1x128xi1> to vector<32x128xi1>
    %36 = vector.broadcast %cst_15 : f32 to vector<32x128xf32>
    %37 = arith.select %35, %36, %15 : vector<32x128xi1>, vector<32x128xf32>
    %38 = arith.subf %29, %22 : vector<32x128xf32>
    %39 = arith.subf %37, %33 : vector<32x128xf32>
    %40 = arith.mulf %38, %38 : vector<32x128xf32>
    %41 = arith.mulf %39, %39 : vector<32x128xf32>
    %42 = arith.addf %40, %41 : vector<32x128xf32>
    %cst_16 = arith.constant 9.99999997E-7 : f32
    %43 = vector.broadcast %cst_16 : f32 to vector<32x128xf32>
    %44 = arith.addf %42, %43 : vector<32x128xf32>
    %45 = math.sqrt %44 : vector<32x128xf32>
    %c0_17 = arith.constant 0 : index
    %c0_18 = arith.constant 0 : index
    %c0_19 = arith.constant 0 : index
    %c0_20 = arith.constant 0 : index
    %46 = vector.load %arg5[%c0_17, %c0_18, %c0_19, %c0_20] : memref<1x3x32x128xf32, #tpu.memory_space<vmem>>, vector<1x1x32x128xf32>
    %47 = vector.shape_cast %46 : vector<1x1x32x128xf32> to vector<32x128xf32>
    %48 = vector.shape_cast %45 : vector<32x128xf32> to vector<1x1x32x128xf32>
    tpu.vector_store %arg5[%c0_17, %c0_18, %c0_19, %c0_20], %48 {strides = array<i32>} : memref<1x3x32x128xf32, #tpu.memory_space<vmem>>, vector<1x1x32x128xf32>,
    %c0_21 = arith.constant 0 : index
    %c1 = arith.constant 1 : index
    %c0_22 = arith.constant 0 : index
    %c0_23 = arith.constant 0 : index
    %49 = vector.load %arg2[%c0_21, %c1, %c0_22, %c0_23] : memref<1x3x32x128xf32, #tpu.memory_space<vmem>>, vector<1x1x32x128xf32>
    %50 = vector.shape_cast %49 : vector<1x1x32x128xf32> to vector<32x128xf32>
    %c1_i32_24 = arith.constant 1 : i32
    %51 = tpu.dynamic_rotate %50 by %c1_i32_24 dim 0 : vector<32x128xf32>, i32 -> vector<32x128xf32>
    %c31_i32_25 = arith.constant 31 : i32
    %52 = tpu.dynamic_rotate %50 by %c31_i32_25 dim 0 : vector<32x128xf32>, i32 -> vector<32x128xf32>
    %c1_i32_26 = arith.constant 1 : i32
    %53 = tpu.dynamic_rotate %50 by %c1_i32_26 dim 1 : vector<32x128xf32>, i32 -> vector<32x128xf32>
    %c127_i32_27 = arith.constant 127 : i32
    %54 = tpu.dynamic_rotate %50 by %c127_i32_27 dim 1 : vector<32x128xf32>, i32 -> vector<32x128xf32>
    %c0_28 = arith.constant 0 : index
    %c0_29 = arith.constant 0 : index
    %c1_30 = arith.constant 1 : index
    %c0_31 = arith.constant 0 : index
    %55 = vector.load %arg3[%c0_28, %c0_29, %c1_30, %c0_31] : memref<1x1x3x128xf32, #tpu.memory_space<vmem>>, vector<1x1x1x128xf32>
    %56 = vector.shape_cast %55 : vector<1x1x1x128xf32> to vector<1x128xf32>
    %57 = vector.shape_cast %3 : vector<32x1xi1> to vector<32x1xi1>
    %58 = vector.broadcast %57 : vector<32x1xi1> to vector<32x128xi1>
    %59 = vector.shape_cast %56 : vector<1x128xf32> to vector<1x128xf32>
    %60 = vector.broadcast %59 : vector<1x128xf32> to vector<32x128xf32>
    %61 = arith.select %58, %60, %51 : vector<32x128xi1>, vector<32x128xf32>
    %c0_32 = arith.constant 0 : index
    %c0_33 = arith.constant 0 : index
    %c1_34 = arith.constant 1 : index
    %c0_35 = arith.constant 0 : index
    %62 = vector.load %arg4[%c0_32, %c0_33, %c1_34, %c0_35] : memref<1x1x3x128xf32, #tpu.memory_space<vmem>>, vector<1x1x1x128xf32>
    %63 = vector.shape_cast %62 : vector<1x1x1x128xf32> to vector<1x128xf32>
    %64 = vector.shape_cast %5 : vector<32x1xi1> to vector<32x1xi1>
    %65 = vector.broadcast %64 : vector<32x1xi1> to vector<32x128xi1>
    %66 = vector.shape_cast %63 : vector<1x128xf32> to vector<1x128xf32>
    %67 = vector.broadcast %66 : vector<1x128xf32> to vector<32x128xf32>
    %68 = arith.select %65, %67, %52 : vector<32x128xi1>, vector<32x128xf32>
    %cst_36 = arith.constant 0.000000e+00 : f32
    %69 = vector.shape_cast %7 : vector<1x128xi1> to vector<1x128xi1>
    %70 = vector.broadcast %69 : vector<1x128xi1> to vector<32x128xi1>
    %71 = vector.broadcast %cst_36 : f32 to vector<32x128xf32>
    %72 = arith.select %70, %71, %53 : vector<32x128xi1>, vector<32x128xf32>
    %cst_37 = arith.constant 0.000000e+00 : f32
    %73 = vector.shape_cast %9 : vector<1x128xi1> to vector<1x128xi1>
    %74 = vector.broadcast %73 : vector<1x128xi1> to vector<32x128xi1>
    %75 = vector.broadcast %cst_37 : f32 to vector<32x128xf32>
    %76 = arith.select %74, %75, %54 : vector<32x128xi1>, vector<32x128xf32>
    %77 = arith.subf %68, %61 : vector<32x128xf32>
    %78 = arith.subf %76, %72 : vector<32x128xf32>
    %79 = arith.mulf %77, %77 : vector<32x128xf32>
    %80 = arith.mulf %78, %78 : vector<32x128xf32>
    %81 = arith.addf %79, %80 : vector<32x128xf32>
    %cst_38 = arith.constant 9.99999997E-7 : f32
    %82 = vector.broadcast %cst_38 : f32 to vector<32x128xf32>
    %83 = arith.addf %81, %82 : vector<32x128xf32>
    %84 = math.sqrt %83 : vector<32x128xf32>
    %c0_39 = arith.constant 0 : index
    %c1_40 = arith.constant 1 : index
    %c0_41 = arith.constant 0 : index
    %c0_42 = arith.constant 0 : index
    %85 = vector.load %arg5[%c0_39, %c1_40, %c0_41, %c0_42] : memref<1x3x32x128xf32, #tpu.memory_space<vmem>>, vector<1x1x32x128xf32>
    %86 = vector.shape_cast %85 : vector<1x1x32x128xf32> to vector<32x128xf32>
    %87 = vector.shape_cast %84 : vector<32x128xf32> to vector<1x1x32x128xf32>
    tpu.vector_store %arg5[%c0_39, %c1_40, %c0_41, %c0_42], %87 {strides = array<i32>} : memref<1x3x32x128xf32, #tpu.memory_space<vmem>>, vector<1x1x32x128xf32>,
    %c0_43 = arith.constant 0 : index
    %c2 = arith.constant 2 : index
    %c0_44 = arith.constant 0 : index
    %c0_45 = arith.constant 0 : index
    %88 = vector.load %arg2[%c0_43, %c2, %c0_44, %c0_45] : memref<1x3x32x128xf32, #tpu.memory_space<vmem>>, vector<1x1x32x128xf32>
    %89 = vector.shape_cast %88 : vector<1x1x32x128xf32> to vector<32x128xf32>
    %c1_i32_46 = arith.constant 1 : i32
    %90 = tpu.dynamic_rotate %89 by %c1_i32_46 dim 0 : vector<32x128xf32>, i32 -> vector<32x128xf32>
    %c31_i32_47 = arith.constant 31 : i32
    %91 = tpu.dynamic_rotate %89 by %c31_i32_47 dim 0 : vector<32x128xf32>, i32 -> vector<32x128xf32>
    %c1_i32_48 = arith.constant 1 : i32
    %92 = tpu.dynamic_rotate %89 by %c1_i32_48 dim 1 : vector<32x128xf32>, i32 -> vector<32x128xf32>
    %c127_i32_49 = arith.constant 127 : i32
    %93 = tpu.dynamic_rotate %89 by %c127_i32_49 dim 1 : vector<32x128xf32>, i32 -> vector<32x128xf32>
    %c0_50 = arith.constant 0 : index
    %c0_51 = arith.constant 0 : index
    %c2_52 = arith.constant 2 : index
    %c0_53 = arith.constant 0 : index
    %94 = vector.load %arg3[%c0_50, %c0_51, %c2_52, %c0_53] : memref<1x1x3x128xf32, #tpu.memory_space<vmem>>, vector<1x1x1x128xf32>
    %95 = vector.shape_cast %94 : vector<1x1x1x128xf32> to vector<1x128xf32>
    %96 = vector.shape_cast %3 : vector<32x1xi1> to vector<32x1xi1>
    %97 = vector.broadcast %96 : vector<32x1xi1> to vector<32x128xi1>
    %98 = vector.shape_cast %95 : vector<1x128xf32> to vector<1x128xf32>
    %99 = vector.broadcast %98 : vector<1x128xf32> to vector<32x128xf32>
    %100 = arith.select %97, %99, %90 : vector<32x128xi1>, vector<32x128xf32>
    %c0_54 = arith.constant 0 : index
    %c0_55 = arith.constant 0 : index
    %c2_56 = arith.constant 2 : index
    %c0_57 = arith.constant 0 : index
    %101 = vector.load %arg4[%c0_54, %c0_55, %c2_56, %c0_57] : memref<1x1x3x128xf32, #tpu.memory_space<vmem>>, vector<1x1x1x128xf32>
    %102 = vector.shape_cast %101 : vector<1x1x1x128xf32> to vector<1x128xf32>
    %103 = vector.shape_cast %5 : vector<32x1xi1> to vector<32x1xi1>
    %104 = vector.broadcast %103 : vector<32x1xi1> to vector<32x128xi1>
    %105 = vector.shape_cast %102 : vector<1x128xf32> to vector<1x128xf32>
    %106 = vector.broadcast %105 : vector<1x128xf32> to vector<32x128xf32>
    %107 = arith.select %104, %106, %91 : vector<32x128xi1>, vector<32x128xf32>
    %cst_58 = arith.constant 0.000000e+00 : f32
    %108 = vector.shape_cast %7 : vector<1x128xi1> to vector<1x128xi1>
    %109 = vector.broadcast %108 : vector<1x128xi1> to vector<32x128xi1>
    %110 = vector.broadcast %cst_58 : f32 to vector<32x128xf32>
    %111 = arith.select %109, %110, %92 : vector<32x128xi1>, vector<32x128xf32>
    %cst_59 = arith.constant 0.000000e+00 : f32
    %112 = vector.shape_cast %9 : vector<1x128xi1> to vector<1x128xi1>
    %113 = vector.broadcast %112 : vector<1x128xi1> to vector<32x128xi1>
    %114 = vector.broadcast %cst_59 : f32 to vector<32x128xf32>
    %115 = arith.select %113, %114, %93 : vector<32x128xi1>, vector<32x128xf32>
    %116 = arith.subf %107, %100 : vector<32x128xf32>
    %117 = arith.subf %115, %111 : vector<32x128xf32>
    %118 = arith.mulf %116, %116 : vector<32x128xf32>
    %119 = arith.mulf %117, %117 : vector<32x128xf32>
    %120 = arith.addf %118, %119 : vector<32x128xf32>
    %cst_60 = arith.constant 9.99999997E-7 : f32
    %121 = vector.broadcast %cst_60 : f32 to vector<32x128xf32>
    %122 = arith.addf %120, %121 : vector<32x128xf32>
    %123 = math.sqrt %122 : vector<32x128xf32>
    %c0_61 = arith.constant 0 : index
    %c2_62 = arith.constant 2 : index
    %c0_63 = arith.constant 0 : index
    %c0_64 = arith.constant 0 : index
    %124 = vector.load %arg5[%c0_61, %c2_62, %c0_63, %c0_64] : memref<1x3x32x128xf32, #tpu.memory_space<vmem>>, vector<1x1x32x128xf32>
    %125 = vector.shape_cast %124 : vector<1x1x32x128xf32> to vector<32x128xf32>
    %126 = vector.shape_cast %123 : vector<32x128xf32> to vector<1x1x32x128xf32>
    tpu.vector_store %arg5[%c0_61, %c2_62, %c0_63, %c0_64], %126 {strides = array<i32>} : memref<1x3x32x128xf32, #tpu.memory_space<vmem>>, vector<1x1x32x128xf32>,
    return
  }
  func.func @transform_0(%arg0: i32, %arg1: i32) -> (i32, i32, i32, i32) {
    %c0_i32 = arith.constant 0 : i32
    %c0_i32_0 = arith.constant 0 : i32
    %c0_i32_1 = arith.constant 0 : i32
    return %arg0, %c0_i32, %arg1, %c0_i32_0 : i32, i32, i32, i32
  }
  func.func @transform_1(%arg0: i32, %arg1: i32) -> (i32, i32, i32, i32) {
    %c0_i32 = arith.constant 0 : i32
    %c0_i32_0 = arith.constant 0 : i32
    %c0_i32_1 = arith.constant 0 : i32
    return %arg0, %arg1, %c0_i32, %c0_i32_0 : i32, i32, i32, i32
  }
  func.func @transform_2(%arg0: i32, %arg1: i32) -> (i32, i32, i32, i32) {
    %c0_i32 = arith.constant 0 : i32
    %c0_i32_0 = arith.constant 0 : i32
    %c0_i32_1 = arith.constant 0 : i32
    return %arg0, %arg1, %c0_i32, %c0_i32_0 : i32, i32, i32, i32
  }
  func.func @transform_3(%arg0: i32, %arg1: i32) -> (i32, i32, i32, i32) {
    %c0_i32 = arith.constant 0 : i32
    %c0_i32_0 = arith.constant 0 : i32
    %c0_i32_1 = arith.constant 0 : i32
    return %arg0, %c0_i32, %arg1, %c0_i32_0 : i32, i32, i32, i32
  }
}

</mosaic_0001>

<llo_original>
// kernel: tpu_custom_call.1
$region0: #{tpu_custom_call.1}
  #allocation0 [shape = 'u32[]', space=smem, size = 0x4, offset = 0x4, fixed_abs, tag = 'smem constant byte address 0x4 - core index']
  #allocation1 [shape = 'u32[144,128]{1,0:T(1,128)}', space=vmem, size = 0x12000, scoped, tag = 'internal scratch']
  %s0 = inlined_call_operand.hbm [shape: f32[2,3,32,128], index: 0, kind: input, shape index: {}]
  %s1 = inlined_call_operand.vmem [shape: f32[2,1,3,128], index: 1, kind: input, shape index: {}]
  %s2 = inlined_call_operand.vmem [shape: f32[2,1,3,128], index: 2, kind: input, shape index: {}]
  %s3 = inlined_call_operand.hbm [shape: f32[2,3,32,128], index: 3, kind: output, shape index: {}]
  %s4 = sld [smem:[#allocation0]]
  $region49: #{tpu_custom_call.1} parent=0
    _
  %s6 = ssub.s32 1, %s4
  %s7 = scalar_select 0, %s6, %s4
  $region1: #{tpu_custom_call.1} parent=0
    #allocation2 [shape = 'u8[98304]{0}', space=vmem, size = 0x18000, scoped, tag = 'input window, operand 0']
    #allocation3 [shape = 's32[2]{0}', space=sflag, size = 0x8, scoped, tag = 'scoped memory for tpu_custom_call.1']
    #allocation4 [shape = 's32[2]{0}', space=sflag, size = 0x8, scoped, tag = 'scoped memory for tpu_custom_call.1']
    #allocation5 [shape = 'u8[98304]{0}', space=vmem, size = 0x18000, scoped, tag = 'output window, operand 0']
    %8 = vsyncpa [#allocation3], 0
    %s9 = scalar_lea.sflag [#allocation3], 1
    %10 = vsyncpa %s9, 0
    %11 = vsyncpa [#allocation4], 0
    %s12 = scalar_lea.sflag [#allocation4], 1
    %13 = vsyncpa %s12, 0
    loop: start=0, step=1, limit=4
    $region2: #{tpu_custom_call.1} parent=1 // loop_pre_header
      _
    $region3: #{tpu_custom_call.1} parent=1 // loop_header
      %s15 = sphi 0, %s19
      %p16 = scmp.ge.s32.totalorder %s15, 4
      %s22 = sphi 0, %s34
      %s23 = sphi 0, %s30
      %s24 = sphi 0, %s22
      %s25 = sphi 0, %s23
      %s26 = sphi 0, %s24
      %s27 = sphi 0, %s25
      %s39 = sphi 0, %s41
      %s42 = sphi 0, %s39
      %s43 = sphi 0, %s42
      %s59 = sphi 0, %s43
      %s67 = sphi 0, %s69
      %s70 = sphi 0, %s67
      %s71 = sphi 0, %s70
      %s87 = sphi 0, %s71
      %s95 = sphi 0, %s97
      %s98 = sphi 0, %s95
      %s99 = sphi 0, %s98
      %s115 = sphi 0, %s99
      %s123 = sphi 0, %s125
      %s126 = sphi 0, %s123
      %s127 = sphi 0, %s126
      %s143 = sphi 0, %s127
    $region4: #{tpu_custom_call.1} parent=1 // loop_header_branch
      %18 = sbr.rel (%p16) target = $region8
    $region5: #{tpu_custom_call.1} parent=1 // loop_body
      %s20 = ssub.s32 %s15, 1
      %s21 = ssub.s32 %s15, 2
      %s28 = sadd.s32 1, %s23
      %p29 = scmp.ge.s32.totalorder %s28, 1
      %s30 = scalar_select %p29, 0, %s28
      %s31 = sadd.s32 1, %s22
      %s32 = scalar_select %p29, %s31, %s22
      %p33 = scmp.ge.s32.totalorder %s32, 2
      %s34 = scalar_select %p33, 0, %s32
      %s35 = ssub.s32 %s22, %s34
      %s36 = ssub.s32 %s23, %s30
      %s37 = sor.u32 %s35, %s36
      %p38 = scmp.eq.s32.totalorder %s37, 0
      %s40 = sadd.s32 %s39, 1
      %s41 = scalar_select %p38, %s39, %s40
      %p44 = pneg %p38
      %p45 = scmp.eq.s32.totalorder %s15, 1
      %p46 = por %p44, %p45
      %p47 = scmp.ne.s32.totalorder %s39, %s42
      %p48 = scmp.eq.s32.totalorder %s15, 0
      %p49 = por %p47, %p48
      %p50 = scmp.ne.s32.totalorder %s39, %s42
      %p51 = scmp.eq.s32.totalorder %s20, 1
      %p52 = por %p50, %p51
      %p53 = scmp.ne.s32.totalorder %s42, %s43
      %p54 = scmp.eq.s32.totalorder %s20, 0
      %p55 = por %p53, %p54
      %p56 = scmp.ne.s32.totalorder %s42, %s43
      %p57 = scmp.eq.s32.totalorder %s21, 1
      %p58 = por %p56, %p57
      %p60 = scmp.ne.s32.totalorder %s43, %s59
      %p61 = scmp.eq.s32.totalorder %s21, 0
      %p62 = por %p60, %p61
      %s63 = ssub.s32 %s22, %s34
      %s64 = ssub.s32 %s23, %s30
      %s65 = sor.u32 %s63, %s64
      %p66 = scmp.eq.s32.totalorder %s65, 0
      %s68 = sadd.s32 %s67, 1
      %s69 = scalar_select %p66, %s67, %s68
      %p72 = pneg %p66
      %p73 = scmp.eq.s32.totalorder %s15, 1
      %p74 = por %p72, %p73
      %p75 = scmp.ne.s32.totalorder %s67, %s70
      %p76 = scmp.eq.s32.totalorder %s15, 0
      %p77 = por %p75, %p76
      %p78 = scmp.ne.s32.totalorder %s67, %s70
      %p79 = scmp.eq.s32.totalorder %s20, 1
      %p80 = por %p78, %p79
      %p81 = scmp.ne.s32.totalorder %s70, %s71
      %p82 = scmp.eq.s32.totalorder %s20, 0
      %p83 = por %p81, %p82
      %p84 = scmp.ne.s32.totalorder %s70, %s71
      %p85 = scmp.eq.s32.totalorder %s21, 1
      %p86 = por %p84, %p85
      %p88 = scmp.ne.s32.totalorder %s71, %s87
      %p89 = scmp.eq.s32.totalorder %s21, 0
      %p90 = por %p88, %p89
      %s91 = ssub.s32 %s22, %s34
      %s92 = ssub.s32 %s23, %s30
      %s93 = sor.u32 %s91, %s92
      %p94 = scmp.eq.s32.totalorder %s93, 0
      %s96 = sadd.s32 %s95, 1
      %s97 = scalar_select %p94, %s95, %s96
      %p100 = pneg %p94
      %p101 = scmp.eq.s32.totalorder %s15, 1
      %p102 = por %p100, %p101
      %p103 = scmp.ne.s32.totalorder %s95, %s98
      %p104 = scmp.eq.s32.totalorder %s15, 0
      %p105 = por %p103, %p104
      %p106 = scmp.ne.s32.totalorder %s95, %s98
      %p107 = scmp.eq.s32.totalorder %s20, 1
      %p108 = por %p106, %p107
      %p109 = scmp.ne.s32.totalorder %s98, %s99
      %p110 = scmp.eq.s32.totalorder %s20, 0
      %p111 = por %p109, %p110
      %p112 = scmp.ne.s32.totalorder %s98, %s99
      %p113 = scmp.eq.s32.totalorder %s21, 1
      %p114 = por %p112, %p113
      %p116 = scmp.ne.s32.totalorder %s99, %s115
      %p117 = scmp.eq.s32.totalorder %s21, 0
      %p118 = por %p116, %p117
      %s119 = ssub.s32 %s22, %s34
      %s120 = ssub.s32 %s23, %s30
      %s121 = sor.u32 %s119, %s120
      %p122 = scmp.eq.s32.totalorder %s121, 0
      %s124 = sadd.s32 %s123, 1
      %s125 = scalar_select %p122, %s123, %s124
      %p128 = pneg %p122
      %p129 = scmp.eq.s32.totalorder %s15, 1
      %p130 = por %p128, %p129
      %p131 = scmp.ne.s32.totalorder %s123, %s126
      %p132 = scmp.eq.s32.totalorder %s15, 0
      %p133 = por %p131, %p132
      %p134 = scmp.ne.s32.totalorder %s123, %s126
      %p135 = scmp.eq.s32.totalorder %s20, 1
      %p136 = por %p134, %p135
      %p137 = scmp.ne.s32.totalorder %s126, %s127
      %p138 = scmp.eq.s32.totalorder %s20, 0
      %p139 = por %p137, %p138
      %p140 = scmp.ne.s32.totalorder %s126, %s127
      %p141 = scmp.eq.s32.totalorder %s21, 1
      %p142 = por %p140, %p141
      %p144 = scmp.ne.s32.totalorder %s127, %s143
      %p145 = scmp.eq.s32.totalorder %s21, 0
      %p146 = por %p144, %p145
      %p147 = scmp.le.s32.totalorder 1, %s15
      %p148 = scmp.lt.s32.totalorder %s15, 3
      %p149 = pnand %p147, %p148
      %p150 = pneg %p149
      // Predicated region
      $region9: #{tpu_custom_call.1} parent=5 // pred_check
        _
      $region10: #{tpu_custom_call.1} parent=5 // pred_check_branch
        %152 = sbr.rel (%p149) target = $region12
      $region11: #{tpu_custom_call.1} parent=5 // pred_region
        %s153 = ssub.s32 %s15, 1
      $region12: #{tpu_custom_call.1} parent=5 // pred_fallthru
        _
      %p154 = scmp.lt.s32.totalorder %s15, 2
      // Predicated region
      $region13: #{tpu_custom_call.1} parent=5 // pred_check
        %p155 = pneg %p154
      $region14: #{tpu_custom_call.1} parent=5 // pred_check_branch
        %157 = sbr.rel (%p155) target = $region16
      $region15: #{tpu_custom_call.1} parent=5 // pred_region
        // Predicated region
        $region17: #{tpu_custom_call.1} parent=15 // pred_check
          %p158 = pneg %p49
        $region18: #{tpu_custom_call.1} parent=15 // pred_check_branch
          %160 = sbr.rel (%p158) target = $region20
        $region19: #{tpu_custom_call.1} parent=15 // pred_region
          %s161 = sand.u32 %s39, 1
          %s162 = scalar_lea.sflag [#allocation3], %s161
          %s163 = sand.u32 %s39, 1
          %s164 = smul.addr %s163, 96
          %s165 = scalar_lea.vmem [#allocation2], %s164
          %s166 = smul.u32 4, %s23
          %s168 = ssub.s32 1536, 1536
          %169 = vsyncadd %s162, %s168
          %s170 = smul.addr %s22, 12
          %s171 = sadd.s32 %s166, %s170
          %s172 = smul.addr %s171, 128
          %s173 = scalar_lea.hbm %s0, %s172
          %s174 = sshll.u32 %s165, 4
          %s175 = int_to_ptr.vmem [resolvable:$true] %s174
          %180 = dma.hbm_to_vmem [thread:$0]  %s173, 1536, %s175, %s162, 128, 128, 8
        $region20: #{tpu_custom_call.1} parent=15 // pred_fallthru
          _
        // Predicated region
        $region21: #{tpu_custom_call.1} parent=15 // pred_check
          %p181 = pneg %p77
        $region22: #{tpu_custom_call.1} parent=15 // pred_check_branch
          %183 = sbr.rel (%p181) target = $region24
        $region23: #{tpu_custom_call.1} parent=15 // pred_region
          %p184 = scmp.lt.s32.totalorder %s22, 1
          %s185 = scalar_select %p184, %s22, 1
          %p186 = scmp.lt.s32.totalorder %s23, 0
          %s187 = scalar_select %p186, %s23, 0
          %s188 = sadd.s32 %s187, %s185
          %s189 = smul.addr %s188, 4
          %s190 = scalar_lea.vmem %s1, %s189
        $region24: #{tpu_custom_call.1} parent=15 // pred_fallthru
          _
        // Predicated region
        $region25: #{tpu_custom_call.1} parent=15 // pred_check
          %p191 = pneg %p105
        $region26: #{tpu_custom_call.1} parent=15 // pred_check_branch
          %193 = sbr.rel (%p191) target = $region28
        $region27: #{tpu_custom_call.1} parent=15 // pred_region
          %p194 = scmp.lt.s32.totalorder %s22, 1
          %s195 = scalar_select %p194, %s22, 1
          %p196 = scmp.lt.s32.totalorder %s23, 0
          %s197 = scalar_select %p196, %s23, 0
          %s198 = sadd.s32 %s197, %s195
          %s199 = smul.addr %s198, 4
          %s200 = scalar_lea.vmem %s2, %s199
        $region28: #{tpu_custom_call.1} parent=15 // pred_fallthru
          _
      $region16: #{tpu_custom_call.1} parent=5 // pred_fallthru
        _
      %p201 = scmp.le.s32.totalorder 1, %s15
      %p202 = scmp.lt.s32.totalorder %s15, 3
      %p203 = pnand %p201, %p202
      %p204 = pneg %p203
      // Predicated region
      $region29: #{tpu_custom_call.1} parent=5 // pred_check
        _
      $region30: #{tpu_custom_call.1} parent=5 // pred_check_branch
        %206 = sbr.rel (%p203) target = $region32
      $region31: #{tpu_custom_call.1} parent=5 // pred_region
        %s207 = ssub.s32 %s15, 1
        %s208 = sand.u32 %s42, 1
        %s209 = scalar_lea.sflag [#allocation3], %s208
        %s210 = sand.u32 %s42, 1
        %s211 = smul.addr %s210, 96
        %s212 = scalar_lea.vmem [#allocation2], %s211
        // Predicated region
        $region33: #{tpu_custom_call.1} parent=31 // pred_check
          %p213 = pneg %p55
        $region34: #{tpu_custom_call.1} parent=31 // pred_check_branch
          %215 = sbr.rel (%p213) target = $region36
        $region35: #{tpu_custom_call.1} parent=31 // pred_region
          %216 = dma.done %s209, 1536
        $region36: #{tpu_custom_call.1} parent=31 // pred_fallthru
          _
        %s217 = sand.u32 %s42, 1
        %s218 = scalar_lea.sflag [#allocation3], %s217
        %s219 = sand.u32 %s42, 1
        %s220 = smul.addr %s219, 96
        %s221 = scalar_lea.vmem [#allocation2], %s220
        %p222 = pneg %p55
        %p223 = pneg %p52
        %p224 = scmp.lt.s32.totalorder %s24, 1
        %s225 = scalar_select %p224, %s24, 1
        %p226 = scmp.lt.s32.totalorder %s25, 0
        %s227 = scalar_select %p226, %s25, 0
        %s228 = sadd.s32 %s227, %s225
        %s229 = smul.addr %s228, 4
        %s230 = scalar_lea.vmem %s1, %s229
        %p231 = pneg %p83
        %p232 = pneg %p80
        %p233 = scmp.lt.s32.totalorder %s24, 1
        %s234 = scalar_select %p233, %s24, 1
        %p235 = scmp.lt.s32.totalorder %s25, 0
        %s236 = scalar_select %p235, %s25, 0
        %s237 = sadd.s32 %s236, %s234
        %s238 = smul.addr %s237, 4
        %s239 = scalar_lea.vmem %s2, %s238
        %p240 = pneg %p111
        %p241 = pneg %p108
        %p242 = pneg %p139
        %p243 = pneg %p136
        %s244 = sand.u32 %s126, 1
        %s245 = scalar_lea.sflag [#allocation4], %s244
        %s246 = sand.u32 %s126, 1
        %s247 = smul.addr %s246, 96
        %s248 = scalar_lea.vmem [#allocation5], %s247
        %s249 = smul.u32 4, %s25
        %p250 = scmp.lt.s32.totalorder %s24, 1
        %s251 = scalar_select %p250, %s24, 1
        %p252 = scmp.lt.s32.totalorder %s25, 0
        %s253 = scalar_select %p252, %s25, 0
        %s254 = sadd.s32 %s253, %s251
        %s255 = smul.addr %s254, 4
        %s256 = scalar_lea.vmem %s1, %s255
        %p257 = scmp.lt.s32.totalorder %s24, 1
        %s258 = scalar_select %p257, %s24, 1
        %p259 = scmp.lt.s32.totalorder %s25, 0
        %s260 = scalar_select %p259, %s25, 0
        %s261 = sadd.s32 %s260, %s258
        %s262 = smul.addr %s261, 4
        %s263 = scalar_lea.vmem %s2, %s262
        %s264 = smul.u32 4, %s25
        %v265 = vlaneseq
        %v266 = vshrl.u32 %v265, 7
        %v267 = vadd.s32 %v266, 8
        %v268 = vadd.s32 %v266, 16
        %v269 = vadd.s32 %v266, 24
        %v270 = vlaneseq
        %v271 = vand.u32 %v270, 127
        %vm272 = vcmp.eq.s32.totalorder %v266, 0
        %vm273 = vcmp.eq.s32.totalorder %v267, 0
        %vm274 = vcmp.eq.s32.totalorder %v268, 0
        %vm275 = vcmp.eq.s32.totalorder %v269, 0
        %vm276 = vcmp.eq.s32.totalorder %v266, 31
        %vm277 = vcmp.eq.s32.totalorder %v267, 31
        %vm278 = vcmp.eq.s32.totalorder %v268, 31
        %vm279 = vcmp.eq.s32.totalorder %v269, 31
        %vm280 = vcmp.eq.s32.totalorder %v271, 0
        %vm281 = vcmp.eq.s32.totalorder %v271, 127
        %v282 = vld [vmem:[%s212] sm:$0xff]
        %v283 = vld [vmem:[%s212 + $0x8] sm:$0xff]
        %v284 = vld [vmem:[%s212 + $0x10] sm:$0xff]
        %v285 = vld [vmem:[%s212 + $0x18] sm:$0xff]
        %v286 = vrot.slane %v282, 7
        %v287 = vrot.slane %v283, 7
        %v288 = vrot.slane %v284, 7
        %v289 = vrot.slane %v285, 7
        %vm290 = vcmp.lt.s32.totalorder %v266, 1
        %v291 = vsel %vm290, %v288, %v289
        %v292 = vsel %vm290, %v287, %v288
        %v293 = vsel %vm290, %v286, %v287
        %v294 = vsel %vm290, %v289, %v286
        %v295 = vrot.slane %v282, 1
        %v296 = vrot.slane %v283, 1
        %v297 = vrot.slane %v284, 1
        %v298 = vrot.slane %v285, 1
        %vm299 = vcmp.lt.s32.totalorder %v266, 7
        %v300 = vsel %vm299, %v297, %v298
        %v301 = vsel %vm299, %v296, %v297
        %v302 = vsel %vm299, %v295, %v296
        %v303 = vsel %vm299, %v298, %v295
        %304 = vrot.lane.b32.xlu0 %v282, 1
        %v305 = vpop.permute.xlu0 %304
        %306 = vrot.lane.b32.xlu0 %v283, 1
        %v307 = vpop.permute.xlu0 %306
        %308 = vrot.lane.b32.xlu0 %v284, 1
        %v309 = vpop.permute.xlu0 %308
        %310 = vrot.lane.b32.xlu0 %v285, 1
        %v311 = vpop.permute.xlu0 %310
        %312 = vrot.lane.b32.xlu0 %v282, 127
        %v313 = vpop.permute.xlu0 %312
        %314 = vrot.lane.b32.xlu0 %v283, 127
        %v315 = vpop.permute.xlu0 %314
        %316 = vrot.lane.b32.xlu0 %v284, 127
        %v317 = vpop.permute.xlu0 %316
        %318 = vrot.lane.b32.xlu0 %v285, 127
        %v319 = vpop.permute.xlu0 %318
        %v320 = vld [vmem:[%s256] sm:$0x1]
        %v321 = vsel %vm272, 1, 0
        %v322 = vsel %vm273, 1, 0
        %v323 = vsel %vm274, 1, 0
        %v324 = vsel %vm275, 1, 0
        %vm325 = vcmp.eq.s32.totalorder %v321, 1
        %vm326 = vcmp.eq.s32.totalorder %v322, 1
        %vm327 = vcmp.eq.s32.totalorder %v323, 1
        %vm328 = vcmp.eq.s32.totalorder %v324, 1
        %v329 = vlaneseq
        %v330 = vshrl.u32 %v329, 7
        %v331 = vsub.s32 0, %v330
        %v332 = vrot.slane %v320, %v331
        %v333 = vsel %vm325, %v332, %v294
        %v334 = vsel %vm326, %v332, %v293
        %v335 = vsel %vm327, %v332, %v292
        %v336 = vsel %vm328, %v332, %v291
        %v337 = vld [vmem:[%s263] sm:$0x1]
        %v338 = vsel %vm276, 1, 0
        %v339 = vsel %vm277, 1, 0
        %v340 = vsel %vm278, 1, 0
        %v341 = vsel %vm279, 1, 0
        %vm342 = vcmp.eq.s32.totalorder %v338, 1
        %vm343 = vcmp.eq.s32.totalorder %v339, 1
        %vm344 = vcmp.eq.s32.totalorder %v340, 1
        %vm345 = vcmp.eq.s32.totalorder %v341, 1
        %v346 = vlaneseq
        %v347 = vshrl.u32 %v346, 7
        %v348 = vsub.s32 0, %v347
        %v349 = vrot.slane %v337, %v348
        %v350 = vsel %vm342, %v349, %v302
        %v351 = vsel %vm343, %v349, %v301
        %v352 = vsel %vm344, %v349, %v300
        %v353 = vsel %vm345, %v349, %v303
        %v354 = vsel %vm280, 1, 0
        %vm355 = vcmp.eq.s32.totalorder %v354, 1
        %v356 = vsel %vm355, 0.0, %v305
        %v357 = vsel %vm355, 0.0, %v307
        %v358 = vsel %vm355, 0.0, %v309
        %v359 = vsel %vm355, 0.0, %v311
        %v360 = vsel %vm281, 1, 0
        %vm361 = vcmp.eq.s32.totalorder %v360, 1
        %v362 = vsel %vm361, 0.0, %v313
        %v363 = vsel %vm361, 0.0, %v315
        %v364 = vsel %vm361, 0.0, %v317
        %v365 = vsel %vm361, 0.0, %v319
        %v366 = vsub.f32 %v350, %v333
        %v367 = vsub.f32 %v351, %v334
        %v368 = vsub.f32 %v352, %v335
        %v369 = vsub.f32 %v353, %v336
        %v370 = vsub.f32 %v362, %v356
        %v371 = vsub.f32 %v363, %v357
        %v372 = vsub.f32 %v364, %v358
        %v373 = vsub.f32 %v365, %v359
        %v374 = vmul.f32 %v366, %v366
        %v375 = vmul.f32 %v367, %v367
        %v376 = vmul.f32 %v368, %v368
        %v377 = vmul.f32 %v369, %v369
        %v378 = vmul.f32 %v370, %v370
        %v379 = vmul.f32 %v371, %v371
        %v380 = vmul.f32 %v372, %v372
        %v381 = vmul.f32 %v373, %v373
        %v382 = vadd.f32 %v374, %v378
        %v383 = vadd.f32 %v375, %v379
        %v384 = vadd.f32 %v376, %v380
        %v385 = vadd.f32 %v377, %v381
        %v386 = vadd.f32 %v382, 1e-06
        %v387 = vadd.f32 %v383, 1e-06
        %v388 = vadd.f32 %v384, 1e-06
        %v389 = vadd.f32 %v385, 1e-06
        %v390 = vrsqrt.pop %v386
        %v391 = vmul.f32 %v386, %v390
        %vm392 = vcmp.eq.f32.partialorder %v386, inf
        %v393 = vsel %vm392, %v386, %v391
        %vm394 = vcmp.eq.f32.partialorder %v386, 0.0
        %v395 = vand.u32 %v386, 2147483648
        %v396 = vsel %vm394, %v395, %v393
        %v397 = vrsqrt.pop %v387
        %v398 = vmul.f32 %v387, %v397
        %vm399 = vcmp.eq.f32.partialorder %v387, inf
        %v400 = vsel %vm399, %v387, %v398
        %vm401 = vcmp.eq.f32.partialorder %v387, 0.0
        %v402 = vand.u32 %v387, 2147483648
        %v403 = vsel %vm401, %v402, %v400
        %v404 = vrsqrt.pop %v388
        %v405 = vmul.f32 %v388, %v404
        %vm406 = vcmp.eq.f32.partialorder %v388, inf
        %v407 = vsel %vm406, %v388, %v405
        %vm408 = vcmp.eq.f32.partialorder %v388, 0.0
        %v409 = vand.u32 %v388, 2147483648
        %v410 = vsel %vm408, %v409, %v407
        %v411 = vrsqrt.pop %v389
        %v412 = vmul.f32 %v389, %v411
        %vm413 = vcmp.eq.f32.partialorder %v389, inf
        %v414 = vsel %vm413, %v389, %v412
        %vm415 = vcmp.eq.f32.partialorder %v389, 0.0
        %v416 = vand.u32 %v389, 2147483648
        %v417 = vsel %vm415, %v416, %v414
        %418 = vst [vmem:[%s248] sm:$0xff] %v396
        %419 = vst [vmem:[%s248 + $0x8] sm:$0xff] %v403
        %420 = vst [vmem:[%s248 + $0x10] sm:$0xff] %v410
        %421 = vst [vmem:[%s248 + $0x18] sm:$0xff] %v417
        %s422 = scalar_lea.vmem %s212, 32 [#allocation2]
        %v423 = vld [vmem:[%s422] sm:$0xff]
        %v424 = vld [vmem:[%s422 + $0x8] sm:$0xff]
        %v425 = vld [vmem:[%s422 + $0x10] sm:$0xff]
        %v426 = vld [vmem:[%s422 + $0x18] sm:$0xff]
        %v427 = vrot.slane %v423, 7
        %v428 = vrot.slane %v424, 7
        %v429 = vrot.slane %v425, 7
        %v430 = vrot.slane %v426, 7
        %v431 = vsel %vm290, %v429, %v430
        %v432 = vsel %vm290, %v428, %v429
        %v433 = vsel %vm290, %v427, %v428
        %v434 = vsel %vm290, %v430, %v427
        %v435 = vrot.slane %v423, 1
        %v436 = vrot.slane %v424, 1
        %v437 = vrot.slane %v425, 1
        %v438 = vrot.slane %v426, 1
        %v439 = vsel %vm299, %v437, %v438
        %v440 = vsel %vm299, %v436, %v437
        %v441 = vsel %vm299, %v435, %v436
        %v442 = vsel %vm299, %v438, %v435
        %443 = vrot.lane.b32.xlu0 %v423, 1
        %v444 = vpop.permute.xlu0 %443
        %445 = vrot.lane.b32.xlu0 %v424, 1
        %v446 = vpop.permute.xlu0 %445
        %447 = vrot.lane.b32.xlu0 %v425, 1
        %v448 = vpop.permute.xlu0 %447
        %449 = vrot.lane.b32.xlu0 %v426, 1
        %v450 = vpop.permute.xlu0 %449
        %451 = vrot.lane.b32.xlu0 %v423, 127
        %v452 = vpop.permute.xlu0 %451
        %453 = vrot.lane.b32.xlu0 %v424, 127
        %v454 = vpop.permute.xlu0 %453
        %455 = vrot.lane.b32.xlu0 %v425, 127
        %v456 = vpop.permute.xlu0 %455
        %457 = vrot.lane.b32.xlu0 %v426, 127
        %v458 = vpop.permute.xlu0 %457
        %v459 = vld [vmem:[%s256 + $0x1] sm:$0x1]
        %v460 = vlaneseq
        %v461 = vshrl.u32 %v460, 7
        %v462 = vsub.s32 0, %v461
        %v463 = vrot.slane %v459, %v462
        %v464 = vsel %vm325, %v463, %v434
        %v465 = vsel %vm326, %v463, %v433
        %v466 = vsel %vm327, %v463, %v432
        %v467 = vsel %vm328, %v463, %v431
        %v468 = vld [vmem:[%s263 + $0x1] sm:$0x1]
        %v469 = vlaneseq
        %v470 = vshrl.u32 %v469, 7
        %v471 = vsub.s32 0, %v470
        %v472 = vrot.slane %v468, %v471
        %v473 = vsel %vm342, %v472, %v441
        %v474 = vsel %vm343, %v472, %v440
        %v475 = vsel %vm344, %v472, %v439
        %v476 = vsel %vm345, %v472, %v442
        %v477 = vsel %vm355, 0.0, %v444
        %v478 = vsel %vm355, 0.0, %v446
        %v479 = vsel %vm355, 0.0, %v448
        %v480 = vsel %vm355, 0.0, %v450
        %v481 = vsel %vm361, 0.0, %v452
        %v482 = vsel %vm361, 0.0, %v454
        %v483 = vsel %vm361, 0.0, %v456
        %v484 = vsel %vm361, 0.0, %v458
        %v485 = vsub.f32 %v473, %v464
        %v486 = vsub.f32 %v474, %v465
        %v487 = vsub.f32 %v475, %v466
        %v488 = vsub.f32 %v476, %v467
        %v489 = vsub.f32 %v481, %v477
        %v490 = vsub.f32 %v482, %v478
        %v491 = vsub.f32 %v483, %v479
        %v492 = vsub.f32 %v484, %v480
        %v493 = vmul.f32 %v485, %v485
        %v494 = vmul.f32 %v486, %v486
        %v495 = vmul.f32 %v487, %v487
        %v496 = vmul.f32 %v488, %v488
        %v497 = vmul.f32 %v489, %v489
        %v498 = vmul.f32 %v490, %v490
        %v499 = vmul.f32 %v491, %v491
        %v500 = vmul.f32 %v492, %v492
        %v501 = vadd.f32 %v493, %v497
        %v502 = vadd.f32 %v494, %v498
        %v503 = vadd.f32 %v495, %v499
        %v504 = vadd.f32 %v496, %v500
        %v505 = vadd.f32 %v501, 1e-06
        %v506 = vadd.f32 %v502, 1e-06
        %v507 = vadd.f32 %v503, 1e-06
        %v508 = vadd.f32 %v504, 1e-06
        %v509 = vrsqrt.pop %v505
        %v510 = vmul.f32 %v505, %v509
        %vm511 = vcmp.eq.f32.partialorder %v505, inf
        %v512 = vsel %vm511, %v505, %v510
        %vm513 = vcmp.eq.f32.partialorder %v505, 0.0
        %v514 = vand.u32 %v505, 2147483648
        %v515 = vsel %vm513, %v514, %v512
        %v516 = vrsqrt.pop %v506
        %v517 = vmul.f32 %v506, %v516
        %vm518 = vcmp.eq.f32.partialorder %v506, inf
        %v519 = vsel %vm518, %v506, %v517
        %vm520 = vcmp.eq.f32.partialorder %v506, 0.0
        %v521 = vand.u32 %v506, 2147483648
        %v522 = vsel %vm520, %v521, %v519
        %v523 = vrsqrt.pop %v507
        %v524 = vmul.f32 %v507, %v523
        %vm525 = vcmp.eq.f32.partialorder %v507, inf
        %v526 = vsel %vm525, %v507, %v524
        %vm527 = vcmp.eq.f32.partialorder %v507, 0.0
        %v528 = vand.u32 %v507, 2147483648
        %v529 = vsel %vm527, %v528, %v526
        %v530 = vrsqrt.pop %v508
        %v531 = vmul.f32 %v508, %v530
        %vm532 = vcmp.eq.f32.partialorder %v508, inf
        %v533 = vsel %vm532, %v508, %v531
        %vm534 = vcmp.eq.f32.partialorder %v508, 0.0
        %v535 = vand.u32 %v508, 2147483648
        %v536 = vsel %vm534, %v535, %v533
        %s537 = scalar_lea.vmem %s248, 32 [#allocation5]
        %538 = vst [vmem:[%s537] sm:$0xff] %v515
        %539 = vst [vmem:[%s537 + $0x8] sm:$0xff] %v522
        %540 = vst [vmem:[%s537 + $0x10] sm:$0xff] %v529
        %541 = vst [vmem:[%s537 + $0x18] sm:$0xff] %v536
        %s542 = scalar_lea.vmem %s212, 64 [#allocation2]
        %v543 = vld [vmem:[%s542] sm:$0xff]
        %v544 = vld [vmem:[%s542 + $0x8] sm:$0xff]
        %v545 = vld [vmem:[%s542 + $0x10] sm:$0xff]
        %v546 = vld [vmem:[%s542 + $0x18] sm:$0xff]
        %v547 = vrot.slane %v543, 7
        %v548 = vrot.slane %v544, 7
        %v549 = vrot.slane %v545, 7
        %v550 = vrot.slane %v546, 7
        %v551 = vsel %vm290, %v549, %v550
        %v552 = vsel %vm290, %v548, %v549
        %v553 = vsel %vm290, %v547, %v548
        %v554 = vsel %vm290, %v550, %v547
        %v555 = vrot.slane %v543, 1
        %v556 = vrot.slane %v544, 1
        %v557 = vrot.slane %v545, 1
        %v558 = vrot.slane %v546, 1
        %v559 = vsel %vm299, %v557, %v558
        %v560 = vsel %vm299, %v556, %v557
        %v561 = vsel %vm299, %v555, %v556
        %v562 = vsel %vm299, %v558, %v555
        %563 = vrot.lane.b32.xlu0 %v543, 1
        %v564 = vpop.permute.xlu0 %563
        %565 = vrot.lane.b32.xlu0 %v544, 1
        %v566 = vpop.permute.xlu0 %565
        %567 = vrot.lane.b32.xlu0 %v545, 1
        %v568 = vpop.permute.xlu0 %567
        %569 = vrot.lane.b32.xlu0 %v546, 1
        %v570 = vpop.permute.xlu0 %569
        %571 = vrot.lane.b32.xlu0 %v543, 127
        %v572 = vpop.permute.xlu0 %571
        %573 = vrot.lane.b32.xlu0 %v544, 127
        %v574 = vpop.permute.xlu0 %573
        %575 = vrot.lane.b32.xlu0 %v545, 127
        %v576 = vpop.permute.xlu0 %575
        %577 = vrot.lane.b32.xlu0 %v546, 127
        %v578 = vpop.permute.xlu0 %577
        %v579 = vld [vmem:[%s256 + $0x2] sm:$0x1]
        %v580 = vlaneseq
        %v581 = vshrl.u32 %v580, 7
        %v582 = vsub.s32 0, %v581
        %v583 = vrot.slane %v579, %v582
        %v584 = vsel %vm325, %v583, %v554
        %v585 = vsel %vm326, %v583, %v553
        %v586 = vsel %vm327, %v583, %v552
        %v587 = vsel %vm328, %v583, %v551
        %v588 = vld [vmem:[%s263 + $0x2] sm:$0x1]
        %v589 = vlaneseq
        %v590 = vshrl.u32 %v589, 7
        %v591 = vsub.s32 0, %v590
        %v592 = vrot.slane %v588, %v591
        %v593 = vsel %vm342, %v592, %v561
        %v594 = vsel %vm343, %v592, %v560
        %v595 = vsel %vm344, %v592, %v559
        %v596 = vsel %vm345, %v592, %v562
        %v597 = vsel %vm355, 0.0, %v564
        %v598 = vsel %vm355, 0.0, %v566
        %v599 = vsel %vm355, 0.0, %v568
        %v600 = vsel %vm355, 0.0, %v570
        %v601 = vsel %vm361, 0.0, %v572
        %v602 = vsel %vm361, 0.0, %v574
        %v603 = vsel %vm361, 0.0, %v576
        %v604 = vsel %vm361, 0.0, %v578
        %v605 = vsub.f32 %v593, %v584
        %v606 = vsub.f32 %v594, %v585
        %v607 = vsub.f32 %v595, %v586
        %v608 = vsub.f32 %v596, %v587
        %v609 = vsub.f32 %v601, %v597
        %v610 = vsub.f32 %v602, %v598
        %v611 = vsub.f32 %v603, %v599
        %v612 = vsub.f32 %v604, %v600
        %v613 = vmul.f32 %v605, %v605
        %v614 = vmul.f32 %v606, %v606
        %v615 = vmul.f32 %v607, %v607
        %v616 = vmul.f32 %v608, %v608
        %v617 = vmul.f32 %v609, %v609
        %v618 = vmul.f32 %v610, %v610
        %v619 = vmul.f32 %v611, %v611
        %v620 = vmul.f32 %v612, %v612
        %v621 = vadd.f32 %v613, %v617
        %v622 = vadd.f32 %v614, %v618
        %v623 = vadd.f32 %v615, %v619
        %v624 = vadd.f32 %v616, %v620
        %v625 = vadd.f32 %v621, 1e-06
        %v626 = vadd.f32 %v622, 1e-06
        %v627 = vadd.f32 %v623, 1e-06
        %v628 = vadd.f32 %v624, 1e-06
        %v629 = vrsqrt.pop %v625
        %v630 = vmul.f32 %v625, %v629
        %vm631 = vcmp.eq.f32.partialorder %v625, inf
        %v632 = vsel %vm631, %v625, %v630
        %vm633 = vcmp.eq.f32.partialorder %v625, 0.0
        %v634 = vand.u32 %v625, 2147483648
        %v635 = vsel %vm633, %v634, %v632
        %v636 = vrsqrt.pop %v626
        %v637 = vmul.f32 %v626, %v636
        %vm638 = vcmp.eq.f32.partialorder %v626, inf
        %v639 = vsel %vm638, %v626, %v637
        %vm640 = vcmp.eq.f32.partialorder %v626, 0.0
        %v641 = vand.u32 %v626, 2147483648
        %v642 = vsel %vm640, %v641, %v639
        %v643 = vrsqrt.pop %v627
        %v644 = vmul.f32 %v627, %v643
        %vm645 = vcmp.eq.f32.partialorder %v627, inf
        %v646 = vsel %vm645, %v627, %v644
        %vm647 = vcmp.eq.f32.partialorder %v627, 0.0
        %v648 = vand.u32 %v627, 2147483648
        %v649 = vsel %vm647, %v648, %v646
        %v650 = vrsqrt.pop %v628
        %v651 = vmul.f32 %v628, %v650
        %vm652 = vcmp.eq.f32.partialorder %v628, inf
        %v653 = vsel %vm652, %v628, %v651
        %vm654 = vcmp.eq.f32.partialorder %v628, 0.0
        %v655 = vand.u32 %v628, 2147483648
        %v656 = vsel %vm654, %v655, %v653
        %s657 = scalar_lea.vmem %s248, 64 [#allocation5]
        %658 = vst [vmem:[%s657] sm:$0xff] %v635
        %659 = vst [vmem:[%s657 + $0x8] sm:$0xff] %v642
        %660 = vst [vmem:[%s657 + $0x10] sm:$0xff] %v649
        %661 = vst [vmem:[%s657 + $0x18] sm:$0xff] %v656
        %s662 = sand.u32 %s126, 1
        %s663 = scalar_lea.sflag [#allocation4], %s662
        %s664 = sand.u32 %s126, 1
        %s665 = smul.addr %s664, 96
        %s666 = scalar_lea.vmem [#allocation5], %s665
        // Predicated region
        $region37: #{tpu_custom_call.1} parent=31 // pred_check
          %p667 = pneg %p136
        $region38: #{tpu_custom_call.1} parent=31 // pred_check_branch
          %669 = sbr.rel (%p667) target = $region40
        $region39: #{tpu_custom_call.1} parent=31 // pred_region
          %s670 = smul.u32 4, %s25
          %s672 = ssub.s32 1536, 1536
          %673 = vsyncadd %s663, %s672
          %s674 = smul.addr %s24, 12
          %s675 = sadd.s32 %s670, %s674
          %s676 = smul.addr %s675, 128
          %s677 = scalar_lea.hbm %s3, %s676
          %s678 = sshll.u32 %s666, 4
          %s679 = int_to_ptr.vmem [resolvable:$true] %s678
          %684 = dma.vmem_to_hbm [thread:$0]  %s679, 1536, %s677, %s663, 128, 128, 8
        $region40: #{tpu_custom_call.1} parent=31 // pred_fallthru
          _
      $region32: #{tpu_custom_call.1} parent=5 // pred_fallthru
        _
      %p685 = scmp.le.s32.totalorder 2, %s15
      // Predicated region
      $region41: #{tpu_custom_call.1} parent=5 // pred_check
        %p686 = pneg %p685
      $region42: #{tpu_custom_call.1} parent=5 // pred_check_branch
        %688 = sbr.rel (%p686) target = $region44
      $region43: #{tpu_custom_call.1} parent=5 // pred_region
        %s689 = ssub.s32 %s15, 2
        // Predicated region
        $region45: #{tpu_custom_call.1} parent=43 // pred_check
          %p690 = pneg %p142
        $region46: #{tpu_custom_call.1} parent=43 // pred_check_branch
          %692 = sbr.rel (%p690) target = $region48
        $region47: #{tpu_custom_call.1} parent=43 // pred_region
          %s693 = sand.u32 %s127, 1
          %s694 = scalar_lea.sflag [#allocation4], %s693
          %s695 = sand.u32 %s127, 1
          %s696 = smul.addr %s695, 96
          %s697 = scalar_lea.vmem [#allocation5], %s696
          %698 = dma.done %s694, 1536
        $region48: #{tpu_custom_call.1} parent=43 // pred_fallthru
          _
      $region44: #{tpu_custom_call.1} parent=5 // pred_fallthru
        _
    $region6: #{tpu_custom_call.1} parent=1 // loop_footer
      %s19 = sadd.s32 1, %s15
    $region7: #{tpu_custom_call.1} parent=1 // loop_footer_branch
      %14 = sbr.rel target = $region3
    $region8: #{tpu_custom_call.1} parent=1 // loop_exit
      _
    %699 = vsyncpa [#allocation3], 1
    %s700 = scalar_lea.sflag [#allocation3], 1
    %701 = vsyncpa %s700, 1
    %702 = vsyncpa [#allocation4], 1
    %s703 = scalar_lea.sflag [#allocation4], 1
    %704 = vsyncpa %s703, 1

</llo_original>
